<compile_context>
chip_gen: v6e
topology: v6e:2x2x1
jax: 0.10.0
libtpu: 0.0.40
codegen_flags: <defaults>
</compile_context>

<pallas_src>
import functools

import jax
import jax.numpy as jnp
from jax.experimental import pallas as pl
from jax.experimental.pallas import tpu as pltpu

_LANES = 128
_SUBLANES = 8


def _round_up(a, b):
    return ((a + b - 1) // b) * b


def _bce_body(x_ref, t_ref, w_ref, out_ref, *, full_rows, rem, steps_per_chunk):
    p = pl.program_id(0)   # parallel chunk
    k = pl.program_id(1)   # sequential reduction step within the chunk

    @pl.when(k == 0)
    def _():
        out_ref[...] = jnp.zeros_like(out_ref)

    x = x_ref[...].astype(jnp.float32)
    t = t_ref[...].astype(jnp.float32)
    br, lanes = x.shape

    # Numerically stable BCE-with-logits (matches PyTorch's formulation):
    #   loss = max(x, 0) - x * t + log(1 + exp(-|x|))
    loss = jnp.maximum(x, 0.0) - x * t + jnp.log1p(jnp.exp(-jnp.abs(x)))
    if w_ref is not None:
        loss = loss * w_ref[...].astype(jnp.float32)

    # Mask the ragged tail: rows past the valid element count hold zero padding
    # or undefined edge-block data; zero their contribution (jnp.where also
    # squashes any NaN/inf produced from undefined data).
    row0 = (p * steps_per_chunk + k) * br
    g_row = row0 + jax.lax.broadcasted_iota(jnp.int32, (br, lanes), 0)
    lane = jax.lax.broadcasted_iota(jnp.int32, (br, lanes), 1)
    valid = (g_row < full_rows) | ((g_row == full_rows) & (lane < rem))
    loss = jnp.where(valid, loss, 0.0)

    # Vreg-shaped accumulation into the resident (8, 128) output block:
    # plain VALU adds per step, no per-step cross-lane reduce.
    out_ref[...] += loss.reshape(br // _SUBLANES, _SUBLANES, lanes).sum(axis=0)


def _bce_kernel_weighted(x_ref, t_ref, w_ref, out_ref, **kw):
    _bce_body(x_ref, t_ref, w_ref, out_ref, **kw)


def _bce_kernel_unweighted(x_ref, t_ref, out_ref, **kw):
    _bce_body(x_ref, t_ref, None, out_ref, **kw)


def bce_with_logits_sum(inp, target, weight=None, *, max_block_rows=2048,
                        num_parallel_chunks=2):
    """Equivalent of F.binary_cross_entropy_with_logits(input, target, weight,
    size_average=False): scalar SUM of the per-element losses."""
    assert inp.shape == target.shape
    n = inp.size
    lanes = _LANES

    has_weight = weight is not None
    if has_weight and weight.shape != inp.shape:
        # TODO(synk): for lower-rank broadcastable weights, pass the small weight
        # and broadcast in-kernel instead of materializing a full-size array.
        weight = jnp.broadcast_to(weight, inp.shape)

    # Flatten in native dtype (no eager f32 cast; the kernel casts on the VPU).
    xf = inp.reshape(-1)
    tf = target.reshape(-1)
    wf = weight.reshape(-1) if has_weight else None

    # Pad only up to one (8, 128) tile when misaligned; the tail is masked
    # in-kernel anyway, so padded values never contribute.
    chunk = _SUBLANES * lanes
    n_pad = _round_up(n, chunk)
    if n_pad != n:
        pad = n_pad - n
        xf = jnp.pad(xf, (0, pad))
        tf = jnp.pad(tf, (0, pad))
        if has_weight:
            wf = jnp.pad(wf, (0, pad))

    rows = n_pad // lanes                       # multiple of 8
    block_rows = min(max_block_rows, rows)      # <= rows, multiple of 8
    num_blocks = pl.cdiv(rows, block_rows)

    n_chunks = max(1, min(num_parallel_chunks, num_blocks))   # parallel axis (v7x: 2 TCs)
    steps = pl.cdiv(num_blocks, n_chunks)                      # reduction axis

    full_rows = n // lanes
    rem = n % lanes

    X = xf.reshape(rows, lanes)
    T = tf.reshape(rows, lanes)

    def in_map(p, k):
        # Clamp the (rare) overhang block of the last parallel chunk onto the
        # final real block; its contribution is fully masked to zero in-kernel.
        return (jnp.minimum(p * steps + k, num_blocks - 1), 0)

    in_spec = pl.BlockSpec((block_rows, lanes), in_map)
    out_spec = pl.BlockSpec((_SUBLANES, lanes), lambda p, k: (p, 0))

    kw = dict(full_rows=full_rows, rem=rem, steps_per_chunk=steps)
    if has_weight:
        kernel = functools.partial(_bce_kernel_weighted, **kw)
        in_specs = [in_spec, in_spec, in_spec]
        args = (X, T, wf.reshape(rows, lanes))
    else:
        kernel = functools.partial(_bce_kernel_unweighted, **kw)
        in_specs = [in_spec, in_spec]
        args = (X, T)

    partials = pl.pallas_call(
        kernel,
        out_shape=jax.ShapeDtypeStruct((n_chunks * _SUBLANES, lanes), jnp.float32),
        grid_spec=pltpu.PrefetchScalarGridSpec(
            num_scalar_prefetch=0,
            grid=(n_chunks, steps),
            in_specs=in_specs,
            out_specs=out_spec,
        ),
        compiler_params=pltpu.CompilerParams(
            dimension_semantics=("parallel", "arbitrary"),
            vmem_limit_bytes=32 * 1024 * 1024,
        ),
    )(*args)
    # Single tiny cross-lane/sublane reduce, done once by XLA.
    return jnp.sum(partials)


def _reference(inp, target, weight=None):
    x = inp.astype(jnp.float32)
    t = target.astype(jnp.float32)
    loss = jnp.maximum(x, 0.0) - x * t + jnp.log1p(jnp.exp(-jnp.abs(x)))
    if weight is not None:
        loss = loss * jnp.broadcast_to(weight, x.shape).astype(jnp.float32)
    return jnp.sum(loss)


if __name__ == "__main__":
    key = jax.random.PRNGKey(0)
    k1, k2, k3 = jax.random.split(key, 3)

    # Case 1/2: NCHW segmentation-head-like logits, with and without weight.
    shape = (2, 4, 16, 16)
    x = jax.random.normal(k1, shape, dtype=jnp.float32) * 2.0
    t = (jax.random.uniform(k2, shape) > 0.5).astype(jnp.float32)
    w = jax.random.uniform(k3, shape, dtype=jnp.float32)

    out_nw = bce_with_logits_sum(x, t, None)
    jax.block_until_ready(out_nw)
    assert jnp.allclose(out_nw, _reference(x, t, None), rtol=1e-5, atol=1e-2)

    out_w = bce_with_logits_sum(x, t, w)
    jax.block_until_ready(out_w)
    assert jnp.allclose(out_w, _reference(x, t, w), rtol=1e-5, atol=1e-2)

    # Case 3: misaligned element count -> exercises pad-to-tile + in-kernel masking.
    shape2 = (3, 5, 7, 11)
    x2 = jax.random.normal(k1, shape2, dtype=jnp.float32)
    t2 = (jax.random.uniform(k2, shape2) > 0.5).astype(jnp.float32)
    w2 = jax.random.uniform(k3, shape2, dtype=jnp.float32)
    out2 = bce_with_logits_sum(x2, t2, w2)
    jax.block_until_ready(out2)
    assert jnp.allclose(out2, _reference(x2, t2, w2), rtol=1e-5, atol=1e-2)
    out2_nw = bce_with_logits_sum(x2, t2, None)
    jax.block_until_ready(out2_nw)
    assert jnp.allclose(out2_nw, _reference(x2, t2, None), rtol=1e-5, atol=1e-2)

    # Case 4: force multi-block grid (P=2 parallel chunks, K=3 steps, one clamped
    # overhang block) with a small max_block_rows to exercise the accumulation path.
    shape3 = (2, 5, 32, 32)
    x3 = jax.random.normal(k1, shape3, dtype=jnp.float32)
    t3 = (jax.random.uniform(k2, shape3) > 0.5).astype(jnp.float32)
    out3 = bce_with_logits_sum(x3, t3, None, max_block_rows=16)
    jax.block_until_ready(out3)
    assert jnp.allclose(out3, _reference(x3, t3, None), rtol=1e-5, atol=1e-2)

    print("KERNEL_OK")
</pallas_src>

<mosaic_0001>
module attributes {stable_mosaic.version = 11 : i64} {
  func.func @_bce_kernel_unweighted(%arg0: i32, %arg1: i32, %arg2: memref<16x128xf32, #tpu.memory_space<vmem>>, %arg3: memref<16x128xf32, #tpu.memory_space<vmem>>, %arg4: memref<8x128xf32, #tpu.memory_space<vmem>>) attributes {dimension_semantics = [#tpu.dimension_semantics<parallel>, #tpu.dimension_semantics<arbitrary>], iteration_bounds = array<i64: 1, 1>, scalar_prefetch = 0 : i64, scratch_operands = 0 : i64, tpu.core_type = #tpu.core_type<tc>, window_params = [{transform_indices = @transform_0, window_bounds = array<i64: 16, 128>}, {transform_indices = @transform_1, window_bounds = array<i64: 16, 128>}, {transform_indices = @transform_2, window_bounds = array<i64: 8, 128>}]} {
    %c0_i32 = arith.constant 0 : i32
    %0 = arith.cmpi eq, %arg1, %c0_i32 : i32
    %1 = arith.extui %0 : i1 to i32
    %c0_i32_0 = arith.constant 0 : i32
    %2 = arith.cmpi ne, %1, %c0_i32_0 : i32
    scf.if %2 {
      %cst_14 = arith.constant 0.000000e+00 : f32
      %37 = vector.broadcast %cst_14 : f32 to vector<8x128xf32>
      %c0_15 = arith.constant 0 : index
      %c0_16 = arith.constant 0 : index
      %38 = vector.load %arg4[%c0_15, %c0_16] : memref<8x128xf32, #tpu.memory_space<vmem>>, vector<8x128xf32>
      tpu.vector_store %arg4[%c0_15, %c0_16], %37 {strides = array<i32>} : memref<8x128xf32, #tpu.memory_space<vmem>>, vector<8x128xf32>,
    } else {
    }
    %c0 = arith.constant 0 : index
    %c0_1 = arith.constant 0 : index
    %3 = vector.load %arg2[%c0, %c0_1] : memref<16x128xf32, #tpu.memory_space<vmem>>, vector<16x128xf32>
    %c0_2 = arith.constant 0 : index
    %c0_3 = arith.constant 0 : index
    %4 = vector.load %arg3[%c0_2, %c0_3] : memref<16x128xf32, #tpu.memory_space<vmem>>, vector<16x128xf32>
    %cst = arith.constant 0.000000e+00 : f32
    %5 = vector.broadcast %cst : f32 to vector<16x128xf32>
    %6 = arith.maximumf %3, %5 : vector<16x128xf32>
    %7 = arith.mulf %3, %4 : vector<16x128xf32>
    %8 = arith.subf %6, %7 : vector<16x128xf32>
    %9 = math.absf %3 : vector<16x128xf32>
    %cst_4 = arith.constant 0.000000e+00 : f32
    %10 = vector.broadcast %cst_4 : f32 to vector<16x128xf32>
    %11 = arith.subf %10, %9 : vector<16x128xf32>
    %12 = math.exp %11 : vector<16x128xf32>
    %13 = math.log1p %12 : vector<16x128xf32>
    %14 = arith.addf %8, %13 : vector<16x128xf32>
    %c1_i32 = arith.constant 1 : i32
    %15 = arith.muli %arg0, %c1_i32 : i32
    %16 = arith.addi %15, %arg1 : i32
    %c16_i32 = arith.constant 16 : i32
    %17 = arith.muli %16, %c16_i32 : i32
    %18 = tpu.iota {dimensions = array<i32: 0>} : vector<16x128xi32>
    %19 = vector.broadcast %17 : i32 to vector<16x128xi32>
    %20 = arith.addi %19, %18 : vector<16x128xi32>
    %21 = tpu.iota {dimensions = array<i32: 1>} : vector<16x128xi32>
    %c16_i32_5 = arith.constant 16 : i32
    %22 = vector.broadcast %c16_i32_5 : i32 to vector<16x128xi32>
    %23 = arith.cmpi slt, %20, %22 : vector<16x128xi32>
    %c16_i32_6 = arith.constant 16 : i32
    %24 = vector.broadcast %c16_i32_6 : i32 to vector<16x128xi32>
    %25 = arith.cmpi eq, %20, %24 : vector<16x128xi32>
    %c0_i32_7 = arith.constant 0 : i32
    %26 = vector.broadcast %c0_i32_7 : i32 to vector<16x128xi32>
    %27 = arith.cmpi slt, %21, %26 : vector<16x128xi32>
    %28 = arith.andi %25, %27 : vector<16x128xi1>
    %29 = arith.ori %23, %28 : vector<16x128xi1>
    %cst_8 = arith.constant 0.000000e+00 : f32
    %30 = vector.broadcast %cst_8 : f32 to vector<16x128xf32>
    %31 = arith.select %29, %14, %30 : vector<16x128xi1>, vector<16x128xf32>
    %c0_9 = arith.constant 0 : index
    %c0_10 = arith.constant 0 : index
    %32 = vector.load %arg4[%c0_9, %c0_10] : memref<8x128xf32, #tpu.memory_space<vmem>>, vector<8x128xf32>
    %33 = vector.shape_cast %31 : vector<16x128xf32> to vector<2x8x128xf32>
    %cst_11 = arith.constant dense<0.000000e+00> : vector<8x128xf32>
    %34 = vector.multi_reduction <add>, %33, %cst_11 [0] : vector<2x8x128xf32> to vector<8x128xf32>
    %35 = arith.addf %32, %34 : vector<8x128xf32>
    %c0_12 = arith.constant 0 : index
    %c0_13 = arith.constant 0 : index
    %36 = vector.load %arg4[%c0_12, %c0_13] : memref<8x128xf32, #tpu.memory_space<vmem>>, vector<8x128xf32>
    tpu.vector_store %arg4[%c0_12, %c0_13], %35 {strides = array<i32>} : memref<8x128xf32, #tpu.memory_space<vmem>>, vector<8x128xf32>,
    return
  }
  func.func @transform_0(%arg0: i32, %arg1: i32) -> (i32, i32) {
    %c1_i32 = arith.constant 1 : i32
    %0 = arith.muli %arg0, %c1_i32 : i32
    %1 = arith.addi %0, %arg1 : i32
    %c0_i32 = arith.constant 0 : i32
    %2 = arith.minsi %1, %c0_i32 : i32
    %c0_i32_0 = arith.constant 0 : i32
    %c0_i32_1 = arith.constant 0 : i32
    return %2, %c0_i32_0 : i32, i32
  }
  func.func @transform_1(%arg0: i32, %arg1: i32) -> (i32, i32) {
    %c1_i32 = arith.constant 1 : i32
    %0 = arith.muli %arg0, %c1_i32 : i32
    %1 = arith.addi %0, %arg1 : i32
    %c0_i32 = arith.constant 0 : i32
    %2 = arith.minsi %1, %c0_i32 : i32
    %c0_i32_0 = arith.constant 0 : i32
    %c0_i32_1 = arith.constant 0 : i32
    return %2, %c0_i32_0 : i32, i32
  }
  func.func @transform_2(%arg0: i32, %arg1: i32) -> (i32, i32) {
    %c0_i32 = arith.constant 0 : i32
    %c0_i32_0 = arith.constant 0 : i32
    return %arg0, %c0_i32 : i32, i32
  }
}

</mosaic_0001>

<llo_original>
// kernel: tpu_custom_call.1
$region0: #{tpu_custom_call.1}
  #allocation0 [shape = 'u32[]', space=smem, size = 0x4, offset = 0x4, fixed_abs, tag = 'smem constant byte address 0x4 - core index']
  #allocation1 [shape = 'u32[144,128]{1,0:T(1,128)}', space=vmem, size = 0x12000, scoped, tag = 'internal scratch']
  %s0 = inlined_call_operand.hbm [shape: f32[16,128], index: 0, kind: input, shape index: {}]
  %s1 = inlined_call_operand.hbm [shape: f32[16,128], index: 1, kind: input, shape index: {}]
  %s2 = inlined_call_operand.hbm [shape: f32[8,128], index: 2, kind: output, shape index: {}]
  %s3 = sld [smem:[#allocation0]]
  $region30: #{tpu_custom_call.1} parent=0
    _
  %s5 = ssub.s32 1, %s3
  %s6 = scalar_select 0, %s5, %s3
  $region1: #{tpu_custom_call.1} parent=0
    #allocation2 [shape = 'u8[8192]{0}', space=vmem, size = 0x2000, scoped, tag = 'input window, operand 0, single buffered']
    #allocation3 [shape = 's32[1]{0}', space=sflag, size = 0x4, scoped, tag = 'scoped memory for tpu_custom_call.1']
    #allocation4 [shape = 's32[1]{0}', space=sflag, size = 0x4, scoped, tag = 'scoped memory for tpu_custom_call.1']
    #allocation5 [shape = 'u8[8192]{0}', space=vmem, size = 0x2000, scoped, tag = 'input window, operand 1, single buffered']
    #allocation6 [shape = 's32[1]{0}', space=sflag, size = 0x4, scoped, tag = 'scoped memory for tpu_custom_call.1']
    #allocation7 [shape = 'u8[4096]{0}', space=vmem, size = 0x1000, scoped, tag = 'output window, operand 0, single buffered']
    %7 = vsyncpa [#allocation3], 0
    %8 = vsyncpa [#allocation6], 0
    %9 = vsyncpa [#allocation4], 0
    // Predicated region
    $region2: #{tpu_custom_call.1} parent=1 // pred_check
      _
    $region3: #{tpu_custom_call.1} parent=1 // pred_check_branch
      %11 = sbr.rel (0) target = $region5
    $region4: #{tpu_custom_call.1} parent=1 // pred_region
      %s12 = sadd.s32 0, 0
      %p13 = scmp.lt.s32.totalorder %s12, 0
      %s14 = scalar_select %p13, %s12, 0
      %s15 = smul.u32 2, %s14
      %s17 = ssub.s32 256, 256
      %18 = vsyncadd [#allocation3], %s17
      %s19 = smul.addr %s15, 128
      %s20 = scalar_lea.hbm %s0, %s19
      %s21 = sshll.u32 [#allocation2], 4
      %s22 = int_to_ptr.vmem [resolvable:$true] %s21
      %27 = dma.hbm_to_vmem [thread:$0]  %s20, 256, %s22, [#allocation3], 128, 128, 8
    $region5: #{tpu_custom_call.1} parent=1 // pred_fallthru
      _
    // Predicated region
    $region6: #{tpu_custom_call.1} parent=1 // pred_check
      _
    $region7: #{tpu_custom_call.1} parent=1 // pred_check_branch
      %29 = sbr.rel (0) target = $region9
    $region8: #{tpu_custom_call.1} parent=1 // pred_region
      %s30 = sadd.s32 0, 0
      %p31 = scmp.lt.s32.totalorder %s30, 0
      %s32 = scalar_select %p31, %s30, 0
      %s33 = smul.u32 2, %s32
      %s35 = ssub.s32 256, 256
      %36 = vsyncadd [#allocation6], %s35
      %s37 = smul.addr %s33, 128
      %s38 = scalar_lea.hbm %s1, %s37
      %s39 = sshll.u32 [#allocation5], 4
      %s40 = int_to_ptr.vmem [resolvable:$true] %s39
      %45 = dma.hbm_to_vmem [thread:$0]  %s38, 256, %s40, [#allocation6], 128, 128, 8
    $region9: #{tpu_custom_call.1} parent=1 // pred_fallthru
      _
    // Predicated region
    $region10: #{tpu_custom_call.1} parent=1 // pred_check
      _
    $region11: #{tpu_custom_call.1} parent=1 // pred_check_branch
      %47 = sbr.rel (0) target = $region13
    $region12: #{tpu_custom_call.1} parent=1 // pred_region
      %48 = dma.done [#allocation3], 256
    $region13: #{tpu_custom_call.1} parent=1 // pred_fallthru
      _
    // Predicated region
    $region14: #{tpu_custom_call.1} parent=1 // pred_check
      _
    $region15: #{tpu_custom_call.1} parent=1 // pred_check_branch
      %50 = sbr.rel (0) target = $region17
    $region16: #{tpu_custom_call.1} parent=1 // pred_region
      %51 = dma.done [#allocation6], 256
    $region17: #{tpu_custom_call.1} parent=1 // pred_fallthru
      _
    %s52 = sadd.s32 0, 0
    %p53 = scmp.lt.s32.totalorder %s52, 0
    %s54 = scalar_select %p53, %s52, 0
    %s55 = smul.u32 2, %s54
    %s56 = sadd.s32 0, 0
    %p57 = scmp.lt.s32.totalorder %s56, 0
    %s58 = scalar_select %p57, %s56, 0
    %s59 = smul.u32 2, %s58
    %p60 = scmp.eq.s32.totalorder 0, 0
    // Predicated region
    $region18: #{tpu_custom_call.1} parent=1 // pred_check
      %p61 = pneg %p60
    $region19: #{tpu_custom_call.1} parent=1 // pred_check_branch
      %63 = sbr.rel (%p61) target = $region21
    $region20: #{tpu_custom_call.1} parent=1 // pred_region
      %64 = vst [vmem:[#allocation7] sm:$0xff] 0.0
    $region21: #{tpu_custom_call.1} parent=1 // pred_fallthru
      _
    %v65 = vld [vmem:[#allocation2] sm:$0xff]
    %v66 = vld [vmem:[#allocation2 + $0x8] sm:$0xff]
    %v67 = vld [vmem:[#allocation5] sm:$0xff]
    %v68 = vld [vmem:[#allocation5 + $0x8] sm:$0xff]
    %v69 = vmax.f32 %v65, 0.0
    %v70 = vmax.f32 %v66, 0.0
    %v71 = vmul.f32 %v65, %v67
    %v72 = vmul.f32 %v66, %v68
    %v73 = vsub.f32 %v69, %v71
    %v74 = vsub.f32 %v70, %v72
    %v75 = vand.u32 2147483647, %v65
    %v76 = vand.u32 2147483647, %v66
    %v77 = vsub.f32 0.0, %v75
    %v78 = vsub.f32 0.0, %v76
    %v79 = vmul.f32 %v77, 1.442695
    %v80 = vpow.pop %v79
    %v81 = vmul.f32 %v78, 1.442695
    %v82 = vpow.pop %v81
    %v83 = vadd.f32 %v80, 1.0
    %v84 = vlog2.pop %v83
    %v85 = vmul.f32 %v84, 0.6931472
    %v86 = vmul.f32 -0.5, %v80
    %v87 = vadd.f32 %v86, 1.0
    %v88 = vmul.f32 %v87, %v80
    %v89 = vand.u32 2147483647, %v80
    %vm90 = vcmp.lt.f32.partialorder %v89, 0.0004427343
    %v91 = vsel %vm90, %v88, %v85
    %v92 = vadd.f32 %v82, 1.0
    %v93 = vlog2.pop %v92
    %v94 = vmul.f32 %v93, 0.6931472
    %v95 = vmul.f32 -0.5, %v82
    %v96 = vadd.f32 %v95, 1.0
    %v97 = vmul.f32 %v96, %v82
    %v98 = vand.u32 2147483647, %v82
    %vm99 = vcmp.lt.f32.partialorder %v98, 0.0004427343
    %v100 = vsel %vm99, %v97, %v94
    %v101 = vadd.f32 %v73, %v91
    %v102 = vadd.f32 %v74, %v100
    %s103 = sadd.s32 0, 0
    %s104 = smul.u32 %s103, 16
    %v105 = vlaneseq
    %v106 = vshrl.u32 %v105, 7
    %v107 = vadd.s32 %v106, 8
    %v108 = vstv %s104
    %v109 = vadd.s32 %v108, %v106
    %v110 = vadd.s32 %v108, %v107
    %v111 = vlaneseq
    %v112 = vand.u32 %v111, 127
    %vm113 = vcmp.lt.s32.totalorder %v109, 16
    %vm114 = vcmp.lt.s32.totalorder %v110, 16
    %vm115 = vcmp.eq.s32.totalorder %v109, 16
    %vm116 = vcmp.eq.s32.totalorder %v110, 16
    %vm117 = vcmp.lt.s32.totalorder %v112, 0
    %vm118 = vmand %vm115, %vm117
    %vm119 = vmand %vm116, %vm117
    %vm120 = vmor %vm113, %vm118
    %vm121 = vmor %vm114, %vm119
    %v122 = vsel %vm120, %v101, 0.0
    %v123 = vsel %vm121, %v102, 0.0
    %v124 = vld [vmem:[#allocation7] sm:$0xff]
    %v125 = vadd.f32 %v122, %v123
    %v126 = vadd.f32 %v124, %v125
    %127 = vst [vmem:[#allocation7] sm:$0xff] %v126
    // Predicated region
    $region22: #{tpu_custom_call.1} parent=1 // pred_check
      _
    $region23: #{tpu_custom_call.1} parent=1 // pred_check_branch
      %129 = sbr.rel (0) target = $region25
    $region24: #{tpu_custom_call.1} parent=1 // pred_region
      %s131 = ssub.s32 128, 128
      %132 = vsyncadd [#allocation4], %s131
      %s134 = sshll.u32 [#allocation7], 4
      %s135 = int_to_ptr.vmem [resolvable:$true] %s134
      %137 = dma.vmem_to_hbm [thread:$0]  %s135, 128, %s2, [#allocation4]
    $region25: #{tpu_custom_call.1} parent=1 // pred_fallthru
      _
    // Predicated region
    $region26: #{tpu_custom_call.1} parent=1 // pred_check
      _
    $region27: #{tpu_custom_call.1} parent=1 // pred_check_branch
      %139 = sbr.rel (0) target = $region29
    $region28: #{tpu_custom_call.1} parent=1 // pred_region
      %140 = dma.done [#allocation4], 128
    $region29: #{tpu_custom_call.1} parent=1 // pred_fallthru
      _
    %141 = vsyncpa [#allocation3], 1
    %142 = vsyncpa [#allocation6], 1
    %143 = vsyncpa [#allocation4], 1

</llo_original>
